<compile_context>
chip_gen: v7x
topology: tpu7x:2x2x1
jax: 0.10.0
libtpu: 0.0.40
codegen_flags: <defaults>
</compile_context>

<pallas_src>
import jax
import jax.numpy as jnp
from jax import lax
from jax.experimental import pallas as pl
from jax.experimental.pallas import tpu as pltpu


# ----------------------------------------------------------------------------
# Kernel: one grid step processes a full-seq batch tile entirely in VMEM.
# ----------------------------------------------------------------------------
def _forward_net_kernel(x_ref, m_ref, wh_ref, bh_ref, wo_ref, bo_ref,
                        beta_ref, logit_ref):
    S, Bt, D = x_ref.shape
    Hd = wh_ref.shape[1]

    wh = wh_ref[...]                # (D, Hd)   MXU operand
    bh = bh_ref[...]                # (1, Hd)
    wo = wo_ref[...]                # (1, Hd)   output head as a row vector
    bo = bo_ref[0]                  # scalar from SMEM

    # --- hidden layer + output head, chunked over the sequence axis so the
    # --- live f32 intermediate h stays bounded (~2 MiB per chunk). ----------
    bytes_per_srow = Bt * Hd * 4
    max_h_bytes = 2 * 1024 * 1024
    s_chunk = S
    if S * bytes_per_srow > max_h_bytes:
        s_chunk = max(1, max_h_bytes // bytes_per_srow)
        while S % s_chunk != 0:     # largest divisor of S not exceeding budget
            s_chunk -= 1
    n_chunks = S // s_chunk

    def _logits(x_blk):
        # x_blk: (sc, Bt, D)  ->  (sc, Bt) logits
        sc = x_blk.shape[0]
        h = jnp.dot(x_blk.reshape(sc * Bt, D), wh,
                    preferred_element_type=jnp.float32) + bh   # (sc*Bt, Hd)
        h = jnp.maximum(h, 0.0)                                # relu
        # TODO(synk): dropout -- identity (eval mode).
        # Output head: VPU multiply + lane reduce (not a lane-1 MXU matmul).
        o = jnp.sum(h * wo, axis=-1) + bo                      # (sc*Bt,)
        return o.reshape(sc, Bt)

    if n_chunks == 1:
        logits = _logits(x_ref[...])                           # (S, Bt)
    else:
        def body(c, carry):
            s0 = pl.multiple_of(c * s_chunk, s_chunk)
            logit_ref[pl.ds(s0, s_chunk), :] = _logits(
                x_ref[pl.ds(s0, s_chunk), :, :])
            return carry
        lax.fori_loop(0, n_chunks, body, 0, unroll=True)
        logits = logit_ref[...]                                # (S, Bt)

    # --- masked softmax over the sequence axis, done lane-dense in (Bt, S) --
    m = m_ref[...].astype(jnp.float32)                         # (Bt, S)
    o = logits.T * m                                           # small XLU transpose
    mx = jnp.max(o, axis=-1, keepdims=True)                    # (Bt, 1)
    e = jnp.exp(o - mx) * m
    den = jnp.sum(e, axis=-1, keepdims=True) + 1e-6
    beta = e * pl.reciprocal(den, approx=True)                 # EUP path
    beta_ref[...] = beta.astype(beta_ref.dtype)


# ----------------------------------------------------------------------------
# block_b selection: sublane aligned, fits a VMEM budget, prefers >=2 steps.
# ----------------------------------------------------------------------------
def _pick_block_b(S, B, D, Hd, x_bytes, sub, budget=24 * 1024 * 1024):
    cands = [c for c in range(sub, B + 1, sub) if B % c == 0]
    if not cands:
        return B                    # fall back to full batch (full-dim block)

    def footprint(bb):
        x_t = 2 * S * bb * D * x_bytes            # x tile, double-buffered
        msk = 2 * bb * S * 4                      # mask tile, double-buffered
        out = 2 * bb * S * 4                      # beta tile, double-buffered
        w = 2 * (D * Hd * x_bytes + 2 * Hd * 4)   # weights (double-buffered)
        h_t = min(S * bb * Hd * 4, 2 * 1024 * 1024)   # live h chunk (capped)
        scr = S * bb * 4                          # logits scratch
        return x_t + msk + out + w + h_t + scr

    fits = [c for c in cands if footprint(c) <= budget]
    if not fits:
        return min(cands)
    multi = [c for c in fits if B // c >= 2]      # >=2 steps: v7x 2 TCs + DMA overlap
    return max(multi) if multi else max(fits)


# ----------------------------------------------------------------------------
# Wrapper == ForwardNet.forward (eval mode)
# ----------------------------------------------------------------------------
def forward_net(x, x_mask, params, *, block_b=None, matmul_dtype=None):
    """x: (S, B, D) f32, x_mask: (B, S) {0,1} -> beta: (B, S) f32."""
    S, B, D = x.shape
    w_h, b_h, w_o, b_o = params        # torch shapes: (Hd, D), (Hd,), (1, Hd), (1,)
    Hd = w_h.shape[0]

    # Optional low-precision MXU inputs (softmax path stays f32 in-kernel).
    x_in = x if matmul_dtype is None else x.astype(matmul_dtype)
    in_bytes = jnp.dtype(x_in.dtype).itemsize
    sub = 8 if in_bytes >= 4 else 16   # sublane multiple for the batch tile

    if block_b is None:
        block_b = _pick_block_b(S, B, D, Hd, in_bytes, sub)
    assert B % block_b == 0, "batch must tile evenly"
    assert block_b % sub == 0 or block_b == B, (
        "block_b must be a sublane multiple (8 for f32, 16 for bf16) "
        "or equal to the full batch")

    # One-off layout prep (plain XLA): weights transposed, biases reshaped.
    wh_t = w_h.T.astype(x_in.dtype)                      # (D, Hd)
    bh2 = b_h.reshape(1, Hd).astype(jnp.float32)
    wo_row = w_o.reshape(1, Hd).astype(jnp.float32)
    bo1 = b_o.reshape(1).astype(jnp.float32)             # SMEM scalar
    mask = x_mask.astype(jnp.float32)                    # (B, S), lane-dense

    beta = pl.pallas_call(
        _forward_net_kernel,
        out_shape=jax.ShapeDtypeStruct((B, S), x.dtype),
        grid_spec=pltpu.PrefetchScalarGridSpec(
            num_scalar_prefetch=0,
            grid=(B // block_b,),
            in_specs=[
                pl.BlockSpec((S, block_b, D), lambda b: (0, b, 0)),   # x
                pl.BlockSpec((block_b, S), lambda b: (b, 0)),         # mask (B,S)
                pl.BlockSpec((D, Hd), lambda b: (0, 0)),              # W_h^T (invariant)
                pl.BlockSpec((1, Hd), lambda b: (0, 0)),              # b_h
                pl.BlockSpec((1, Hd), lambda b: (0, 0)),              # w_o row
                pl.BlockSpec(memory_space=pltpu.MemorySpace.SMEM),    # b_o scalar
            ],
            out_specs=pl.BlockSpec((block_b, S), lambda b: (b, 0)),   # beta (B,S)
            scratch_shapes=[pltpu.VMEM((S, block_b), jnp.float32)],   # logits
        ),
        compiler_params=pltpu.CompilerParams(
            dimension_semantics=("parallel",),       # batch tiles independent
            vmem_limit_bytes=32 * 1024 * 1024),
    )(x_in, mask, wh_t, bh2, wo_row, bo1)

    return beta


# ----------------------------------------------------------------------------
# Pure-JAX reference for the correctness check
# ----------------------------------------------------------------------------
def reference_forward(x, x_mask, params):
    w_h, b_h, w_o, b_o = params
    hp = lax.Precision.HIGHEST
    h = jax.nn.relu(jnp.einsum("sbd,hd->sbh", x, w_h, precision=hp) + b_h)
    o = jnp.einsum("sbh,oh->sbo", h, w_o, precision=hp) + b_o        # (S, B, 1)
    o = o[:, :, 0].T                                                 # (B, S)
    m = x_mask.astype(o.dtype)
    o = o * m
    e = jnp.exp(o - jnp.max(o, axis=1, keepdims=True)) * m
    return e / (jnp.sum(e, axis=1, keepdims=True) + 1e-6)


# ----------------------------------------------------------------------------
# Deterministic parameter init (PyTorch Linear default: U(-1/sqrt(fan_in), .))
# ----------------------------------------------------------------------------
def init_params(key, input_size, hidden_size):
    k1, k2, k3, k4 = jax.random.split(key, 4)
    bnd_h = 1.0 / (input_size ** 0.5)
    bnd_o = 1.0 / (hidden_size ** 0.5)
    w_h = jax.random.uniform(k1, (hidden_size, input_size), jnp.float32, -bnd_h, bnd_h)
    b_h = jax.random.uniform(k2, (hidden_size,), jnp.float32, -bnd_h, bnd_h)
    w_o = jax.random.uniform(k3, (1, hidden_size), jnp.float32, -bnd_o, bnd_o)
    b_o = jax.random.uniform(k4, (1,), jnp.float32, -bnd_o, bnd_o)
    return w_h, b_h, w_o, b_o


if __name__ == "__main__":
    # seq_len, batch, input_size, hidden_size (B=16 -> 2 grid steps of 8)
    S, B, D, Hd = 16, 16, 128, 128

    key = jax.random.PRNGKey(0)
    k_x, k_p, k_l = jax.random.split(key, 3)

    x = jax.random.normal(k_x, (S, B, D), dtype=jnp.float32) * 0.5
    lengths = jax.random.randint(k_l, (B,), 3, S + 1)
    x_mask = (jnp.arange(S)[None, :] < lengths[:, None]).astype(jnp.float32)  # (B, S)

    params = init_params(k_p, D, Hd)

    beta = jax.block_until_ready(forward_net(x, x_mask, params))
    ref = reference_forward(x, x_mask, params)

    assert beta.shape == (B, S)
    max_diff = float(jnp.max(jnp.abs(beta - ref)))
    # f32 MXU matmul + approx (EUP) reciprocal in the normalization.
    assert jnp.allclose(beta, ref, atol=2e-3, rtol=2e-3), (
        "mismatch, max abs diff = %g" % max_diff)

    print("KERNEL_OK")
</pallas_src>

<mosaic_0001>
module attributes {stable_mosaic.version = 11 : i64} {
  func.func @_forward_net_kernel(%arg0: i32, %arg1: memref<16x8x128xf32, #tpu.memory_space<vmem>>, %arg2: memref<8x16xf32, #tpu.memory_space<vmem>>, %arg3: memref<128x128xf32, #tpu.memory_space<vmem>>, %arg4: memref<1x128xf32, #tpu.memory_space<vmem>>, %arg5: memref<1x128xf32, #tpu.memory_space<vmem>>, %arg6: memref<1xf32, #tpu.memory_space<smem>>, %arg7: memref<8x16xf32, #tpu.memory_space<vmem>>, %arg8: memref<16x8xf32, #tpu.memory_space<vmem>>) attributes {dimension_semantics = [#tpu.dimension_semantics<parallel>], iteration_bounds = array<i64: 2>, scalar_prefetch = 0 : i64, scratch_operands = 1 : i64, tpu.core_type = #tpu.core_type<tc>, window_params = [{transform_indices = @transform_0, window_bounds = array<i64: 16, 8, 128>}, {transform_indices = @transform_1, window_bounds = array<i64: 8, 16>}, {pipeline_mode = #tpu.pipeline_mode<synchronous>, transform_indices = @transform_2, window_bounds = array<i64: 128, 128>}, {pipeline_mode = #tpu.pipeline_mode<synchronous>, transform_indices = @transform_3, window_bounds = array<i64: 1, 128>}, {pipeline_mode = #tpu.pipeline_mode<synchronous>, transform_indices = @transform_4, window_bounds = array<i64: 1, 128>}, {transform_indices = @transform_5, window_bounds = array<i64: 1>}, {transform_indices = @transform_6, window_bounds = array<i64: 8, 16>}]} {
    %c0 = arith.constant 0 : index
    %c0_0 = arith.constant 0 : index
    %0 = vector.load %arg3[%c0, %c0_0] : memref<128x128xf32, #tpu.memory_space<vmem>>, vector<128x128xf32>
    %c0_1 = arith.constant 0 : index
    %c0_2 = arith.constant 0 : index
    %1 = vector.load %arg4[%c0_1, %c0_2] : memref<1x128xf32, #tpu.memory_space<vmem>>, vector<1x128xf32>
    %c0_3 = arith.constant 0 : index
    %c0_4 = arith.constant 0 : index
    %2 = vector.load %arg5[%c0_3, %c0_4] : memref<1x128xf32, #tpu.memory_space<vmem>>, vector<1x128xf32>
    %c0_5 = arith.constant 0 : index
    %3 = memref.load %arg6[%c0_5] : memref<1xf32, #tpu.memory_space<smem>>
    %c0_6 = arith.constant 0 : index
    %c0_7 = arith.constant 0 : index
    %c0_8 = arith.constant 0 : index
    %4 = vector.load %arg1[%c0_6, %c0_7, %c0_8] : memref<16x8x128xf32, #tpu.memory_space<vmem>>, vector<16x8x128xf32>
    %5 = vector.shape_cast %4 : vector<16x8x128xf32> to vector<128x128xf32>
    %cst = arith.constant dense<0.000000e+00> : vector<128x128xf32>
    %6 = tpu.matmul %5, %0, %cst {dimension_numbers = #tpu.dot_dimension_numbers<[1], [0], [0], [1], [0, 0, 1, 1], [], []>} : vector<128x128xf32>, vector<128x128xf32>, vector<128x128xf32> -> vector<128x128xf32>
    %7 = vector.broadcast %1 : vector<1x128xf32> to vector<128x128xf32>
    %8 = arith.addf %6, %7 : vector<128x128xf32>
    %cst_9 = arith.constant 0.000000e+00 : f32
    %9 = vector.broadcast %cst_9 : f32 to vector<128x128xf32>
    %10 = arith.maximumf %8, %9 : vector<128x128xf32>
    %11 = vector.broadcast %2 : vector<1x128xf32> to vector<128x128xf32>
    %12 = arith.mulf %10, %11 : vector<128x128xf32>
    %cst_10 = arith.constant dense<0.000000e+00> : vector<128xf32>
    %13 = vector.multi_reduction <add>, %12, %cst_10 [1] : vector<128x128xf32> to vector<128xf32>
    %14 = vector.broadcast %3 : f32 to vector<128xf32>
    %15 = arith.addf %13, %14 : vector<128xf32>
    %16 = vector.shape_cast %15 : vector<128xf32> to vector<16x8xf32>
    %c0_11 = arith.constant 0 : index
    %c0_12 = arith.constant 0 : index
    %17 = vector.load %arg2[%c0_11, %c0_12] : memref<8x16xf32, #tpu.memory_space<vmem>>, vector<8x16xf32>
    %18 = tpu.transpose %16, [1, 0] : vector<16x8xf32> -> vector<8x16xf32>
    %19 = arith.mulf %18, %17 : vector<8x16xf32>
    %cst_13 = arith.constant dense<0xFF800000> : vector<8xf32>
    %20 = vector.multi_reduction <maximumf>, %19, %cst_13 [1] : vector<8x16xf32> to vector<8xf32>
    %21 = vector.shape_cast %20 : vector<8xf32> to vector<8x1xf32>
    %22 = vector.broadcast %21 : vector<8x1xf32> to vector<8x16xf32>
    %23 = arith.subf %19, %22 : vector<8x16xf32>
    %24 = math.exp %23 : vector<8x16xf32>
    %25 = arith.mulf %24, %17 : vector<8x16xf32>
    %cst_14 = arith.constant dense<0.000000e+00> : vector<8xf32>
    %26 = vector.multi_reduction <add>, %25, %cst_14 [1] : vector<8x16xf32> to vector<8xf32>
    %27 = vector.shape_cast %26 : vector<8xf32> to vector<8x1xf32>
    %cst_15 = arith.constant 9.99999997E-7 : f32
    %28 = vector.broadcast %cst_15 : f32 to vector<8x1xf32>
    %29 = arith.addf %27, %28 : vector<8x1xf32>
    %30 = tpu.reciprocal %29 {approx = true} : vector<8x1xf32> -> vector<8x1xf32>
    %31 = vector.broadcast %30 : vector<8x1xf32> to vector<8x16xf32>
    %32 = arith.mulf %25, %31 : vector<8x16xf32>
    %c0_16 = arith.constant 0 : index
    %c0_17 = arith.constant 0 : index
    %33 = vector.load %arg7[%c0_16, %c0_17] : memref<8x16xf32, #tpu.memory_space<vmem>>, vector<8x16xf32>
    tpu.vector_store %arg7[%c0_16, %c0_17], %32 {strides = array<i32>} : memref<8x16xf32, #tpu.memory_space<vmem>>, vector<8x16xf32>,
    return
  }
  func.func @transform_0(%arg0: i32) -> (i32, i32, i32) {
    %c0_i32 = arith.constant 0 : i32
    %c0_i32_0 = arith.constant 0 : i32
    %c0_i32_1 = arith.constant 0 : i32
    return %c0_i32, %arg0, %c0_i32_0 : i32, i32, i32
  }
  func.func @transform_1(%arg0: i32) -> (i32, i32) {
    %c0_i32 = arith.constant 0 : i32
    %c0_i32_0 = arith.constant 0 : i32
    return %arg0, %c0_i32 : i32, i32
  }
  func.func @transform_2(%arg0: i32) -> (i32, i32) {
    %c0_i32 = arith.constant 0 : i32
    %c0_i32_0 = arith.constant 0 : i32
    %c0_i32_1 = arith.constant 0 : i32
    return %c0_i32, %c0_i32_0 : i32, i32
  }
  func.func @transform_3(%arg0: i32) -> (i32, i32) {
    %c0_i32 = arith.constant 0 : i32
    %c0_i32_0 = arith.constant 0 : i32
    %c0_i32_1 = arith.constant 0 : i32
    return %c0_i32, %c0_i32_0 : i32, i32
  }
  func.func @transform_4(%arg0: i32) -> (i32, i32) {
    %c0_i32 = arith.constant 0 : i32
    %c0_i32_0 = arith.constant 0 : i32
    %c0_i32_1 = arith.constant 0 : i32
    return %c0_i32, %c0_i32_0 : i32, i32
  }
  func.func @transform_5(%arg0: i32) -> i32 {
    %c0_i32 = arith.constant 0 : i32
    %c0_i32_0 = arith.constant 0 : i32
    return %c0_i32 : i32
  }
  func.func @transform_6(%arg0: i32) -> (i32, i32) {
    %c0_i32 = arith.constant 0 : i32
    %c0_i32_0 = arith.constant 0 : i32
    return %arg0, %c0_i32 : i32, i32
  }
}

</mosaic_0001>

<llo_original>
// kernel: tpu_custom_call.1
$region0: #{tpu_custom_call.1}
  #allocation0 [shape = 'u32[]', space=smem, size = 0x4, offset = 0x4, fixed_abs, tag = 'smem constant byte address 0x4 - core index']
  #allocation1 [shape = 'u32[144,128]{1,0:T(1,128)}', space=vmem, size = 0x12000, scoped, tag = 'internal scratch']
  #allocation2 [shape = 'f32[16,8]{1,0:T(8,128)}', space=vmem, size = 0x2000, scoped, tag = 'scratch operand']
  #allocation3 [shape = 'f32[1]{0:T(128)S(6)}', space=smem, size = 0x200, scoped, tag = 'scoped memory for tpu_custom_call.1']
  %s0 = inlined_call_operand.hbm [shape: f32[16,16,128], index: 0, kind: input, shape index: {}]
  %s1 = inlined_call_operand.hbm [shape: f32[16,16], index: 1, kind: input, shape index: {}]
  %s2 = inlined_call_operand.hbm [shape: f32[128,128], index: 2, kind: input, shape index: {}]
  %s3 = inlined_call_operand.vmem [shape: f32[1,128], index: 3, kind: input, shape index: {}]
  %s4 = inlined_call_operand.vmem [shape: f32[1,128], index: 4, kind: input, shape index: {}]
  %s5 = inlined_call_operand.<no memory space> [shape: f32[1], index: 5, kind: input, shape index: {}]
  %s6 = inlined_call_operand.hbm [shape: f32[16,16], index: 6, kind: output, shape index: {}]
  %s7 = sld [smem:[#allocation0]]
  $region69: #{tpu_custom_call.1} parent=0
    _
  %s9 = ssub.s32 1, %s7
  %s10 = scalar_select 0, %s9, %s7
  %11 = sst [smem:[#allocation3]] %s5
  $region1: #{tpu_custom_call.1} parent=0
    #allocation4 [shape = 'u8[131072]{0}', space=vmem, size = 0x20000, scoped, tag = 'input window, operand 0']
    #allocation5 [shape = 's32[2]{0}', space=sflag, size = 0x8, scoped, tag = 'scoped memory for tpu_custom_call.1']
    #allocation6 [shape = 's32[2]{0}', space=sflag, size = 0x8, scoped, tag = 'scoped memory for tpu_custom_call.1']
    #allocation7 [shape = 'u8[8192]{0}', space=vmem, size = 0x2000, scoped, tag = 'input window, operand 1']
    #allocation8 [shape = 's32[2]{0}', space=sflag, size = 0x8, scoped, tag = 'scoped memory for tpu_custom_call.1']
    #allocation9 [shape = 'u8[65536]{0}', space=vmem, size = 0x10000, scoped, tag = 'input window, operand 2, single buffered']
    #allocation10 [shape = 'u8[8192]{0}', space=vmem, size = 0x2000, scoped, tag = 'output window, operand 0']
    %12 = vsyncpa [#allocation5], 0
    %s13 = scalar_lea.sflag [#allocation5], 1
    %14 = vsyncpa %s13, 0
    %15 = vsyncpa [#allocation8], 0
    %s16 = scalar_lea.sflag [#allocation8], 1
    %17 = vsyncpa %s16, 0
    %18 = vsyncpa [#allocation6], 0
    %s19 = scalar_lea.sflag [#allocation6], 1
    %20 = vsyncpa %s19, 0
    loop: start=0, step=1, limit=4
    $region2: #{tpu_custom_call.1} parent=1 // loop_pre_header
      _
    $region3: #{tpu_custom_call.1} parent=1 // loop_header
      %s22 = sphi 0, %s26
      %p23 = scmp.ge.s32.totalorder %s22, 4
      %s32 = sphi 0, %s34
      %s35 = sphi 0, %s32
      %s36 = sphi 0, %s35
      %s52 = sphi 0, %s36
      %s58 = sphi 0, %s60
      %s61 = sphi 0, %s58
      %s62 = sphi 0, %s61
      %s78 = sphi 0, %s62
      %s82 = sphi 0, %s82
      %s84 = sphi 0, %s82
      %s85 = sphi 0, %s84
      %s99 = sphi 0, %s85
      %s103 = sphi 0, %s103
      %s105 = sphi 0, %s103
      %s106 = sphi 0, %s105
      %s120 = sphi 0, %s106
      %s124 = sphi 0, %s124
      %s126 = sphi 0, %s124
      %s127 = sphi 0, %s126
      %s141 = sphi 0, %s127
      %s145 = sphi 0, %s145
      %s147 = sphi 0, %s145
      %s148 = sphi 0, %s147
      %s162 = sphi 0, %s148
      %s168 = sphi 0, %s170
      %s171 = sphi 0, %s168
      %s172 = sphi 0, %s171
      %s188 = sphi 0, %s172
    $region4: #{tpu_custom_call.1} parent=1 // loop_header_branch
      %25 = sbr.rel (%p23) target = $region8
    $region5: #{tpu_custom_call.1} parent=1 // loop_body
      %s27 = ssub.s32 %s22, 1
      %s28 = ssub.s32 %s22, 2
      %s29 = sadd.s32 %s22, 1
      %s30 = ssub.s32 %s22, %s29
      %p31 = scmp.eq.s32.totalorder %s30, 0
      %s33 = sadd.s32 %s32, 1
      %s34 = scalar_select %p31, %s32, %s33
      %p37 = pneg %p31
      %p38 = scmp.eq.s32.totalorder %s22, 1
      %p39 = por %p37, %p38
      %p40 = scmp.ne.s32.totalorder %s32, %s35
      %p41 = scmp.eq.s32.totalorder %s22, 0
      %p42 = por %p40, %p41
      %p43 = scmp.ne.s32.totalorder %s32, %s35
      %p44 = scmp.eq.s32.totalorder %s27, 1
      %p45 = por %p43, %p44
      %p46 = scmp.ne.s32.totalorder %s35, %s36
      %p47 = scmp.eq.s32.totalorder %s27, 0
      %p48 = por %p46, %p47
      %p49 = scmp.ne.s32.totalorder %s35, %s36
      %p50 = scmp.eq.s32.totalorder %s28, 1
      %p51 = por %p49, %p50
      %p53 = scmp.ne.s32.totalorder %s36, %s52
      %p54 = scmp.eq.s32.totalorder %s28, 0
      %p55 = por %p53, %p54
      %s56 = ssub.s32 %s22, %s29
      %p57 = scmp.eq.s32.totalorder %s56, 0
      %s59 = sadd.s32 %s58, 1
      %s60 = scalar_select %p57, %s58, %s59
      %p63 = pneg %p57
      %p64 = scmp.eq.s32.totalorder %s22, 1
      %p65 = por %p63, %p64
      %p66 = scmp.ne.s32.totalorder %s58, %s61
      %p67 = scmp.eq.s32.totalorder %s22, 0
      %p68 = por %p66, %p67
      %p69 = scmp.ne.s32.totalorder %s58, %s61
      %p70 = scmp.eq.s32.totalorder %s27, 1
      %p71 = por %p69, %p70
      %p72 = scmp.ne.s32.totalorder %s61, %s62
      %p73 = scmp.eq.s32.totalorder %s27, 0
      %p74 = por %p72, %p73
      %p75 = scmp.ne.s32.totalorder %s61, %s62
      %p76 = scmp.eq.s32.totalorder %s28, 1
      %p77 = por %p75, %p76
      %p79 = scmp.ne.s32.totalorder %s62, %s78
      %p80 = scmp.eq.s32.totalorder %s28, 0
      %p81 = por %p79, %p80
      %s83 = sadd.s32 %s82, 1
      %p86 = scmp.eq.s32.totalorder %s22, 1
      %p87 = scmp.ne.s32.totalorder %s82, %s84
      %p88 = scmp.eq.s32.totalorder %s22, 0
      %p89 = por %p87, %p88
      %p90 = scmp.ne.s32.totalorder %s82, %s84
      %p91 = scmp.eq.s32.totalorder %s27, 1
      %p92 = por %p90, %p91
      %p93 = scmp.ne.s32.totalorder %s84, %s85
      %p94 = scmp.eq.s32.totalorder %s27, 0
      %p95 = por %p93, %p94
      %p96 = scmp.ne.s32.totalorder %s84, %s85
      %p97 = scmp.eq.s32.totalorder %s28, 1
      %p98 = por %p96, %p97
      %p100 = scmp.ne.s32.totalorder %s85, %s99
      %p101 = scmp.eq.s32.totalorder %s28, 0
      %p102 = por %p100, %p101
      %s104 = sadd.s32 %s103, 1
      %p107 = scmp.eq.s32.totalorder %s22, 1
      %p108 = scmp.ne.s32.totalorder %s103, %s105
      %p109 = scmp.eq.s32.totalorder %s22, 0
      %p110 = por %p108, %p109
      %p111 = scmp.ne.s32.totalorder %s103, %s105
      %p112 = scmp.eq.s32.totalorder %s27, 1
      %p113 = por %p111, %p112
      %p114 = scmp.ne.s32.totalorder %s105, %s106
      %p115 = scmp.eq.s32.totalorder %s27, 0
      %p116 = por %p114, %p115
      %p117 = scmp.ne.s32.totalorder %s105, %s106
      %p118 = scmp.eq.s32.totalorder %s28, 1
      %p119 = por %p117, %p118
      %p121 = scmp.ne.s32.totalorder %s106, %s120
      %p122 = scmp.eq.s32.totalorder %s28, 0
      %p123 = por %p121, %p122
      %s125 = sadd.s32 %s124, 1
      %p128 = scmp.eq.s32.totalorder %s22, 1
      %p129 = scmp.ne.s32.totalorder %s124, %s126
      %p130 = scmp.eq.s32.totalorder %s22, 0
      %p131 = por %p129, %p130
      %p132 = scmp.ne.s32.totalorder %s124, %s126
      %p133 = scmp.eq.s32.totalorder %s27, 1
      %p134 = por %p132, %p133
      %p135 = scmp.ne.s32.totalorder %s126, %s127
      %p136 = scmp.eq.s32.totalorder %s27, 0
      %p137 = por %p135, %p136
      %p138 = scmp.ne.s32.totalorder %s126, %s127
      %p139 = scmp.eq.s32.totalorder %s28, 1
      %p140 = por %p138, %p139
      %p142 = scmp.ne.s32.totalorder %s127, %s141
      %p143 = scmp.eq.s32.totalorder %s28, 0
      %p144 = por %p142, %p143
      %s146 = sadd.s32 %s145, 1
      %p149 = scmp.eq.s32.totalorder %s22, 1
      %p150 = scmp.ne.s32.totalorder %s145, %s147
      %p151 = scmp.eq.s32.totalorder %s22, 0
      %p152 = por %p150, %p151
      %p153 = scmp.ne.s32.totalorder %s145, %s147
      %p154 = scmp.eq.s32.totalorder %s27, 1
      %p155 = por %p153, %p154
      %p156 = scmp.ne.s32.totalorder %s147, %s148
      %p157 = scmp.eq.s32.totalorder %s27, 0
      %p158 = por %p156, %p157
      %p159 = scmp.ne.s32.totalorder %s147, %s148
      %p160 = scmp.eq.s32.totalorder %s28, 1
      %p161 = por %p159, %p160
      %p163 = scmp.ne.s32.totalorder %s148, %s162
      %p164 = scmp.eq.s32.totalorder %s28, 0
      %p165 = por %p163, %p164
      %s166 = ssub.s32 %s22, %s29
      %p167 = scmp.eq.s32.totalorder %s166, 0
      %s169 = sadd.s32 %s168, 1
      %s170 = scalar_select %p167, %s168, %s169
      %p173 = pneg %p167
      %p174 = scmp.eq.s32.totalorder %s22, 1
      %p175 = por %p173, %p174
      %p176 = scmp.ne.s32.totalorder %s168, %s171
      %p177 = scmp.eq.s32.totalorder %s22, 0
      %p178 = por %p176, %p177
      %p179 = scmp.ne.s32.totalorder %s168, %s171
      %p180 = scmp.eq.s32.totalorder %s27, 1
      %p181 = por %p179, %p180
      %p182 = scmp.ne.s32.totalorder %s171, %s172
      %p183 = scmp.eq.s32.totalorder %s27, 0
      %p184 = por %p182, %p183
      %p185 = scmp.ne.s32.totalorder %s171, %s172
      %p186 = scmp.eq.s32.totalorder %s28, 1
      %p187 = por %p185, %p186
      %p189 = scmp.ne.s32.totalorder %s172, %s188
      %p190 = scmp.eq.s32.totalorder %s28, 0
      %p191 = por %p189, %p190
      %p192 = scmp.le.s32.totalorder 1, %s22
      %p193 = scmp.lt.s32.totalorder %s22, 3
      %p194 = pnand %p192, %p193
      %p195 = pneg %p194
      // Predicated region
      $region9: #{tpu_custom_call.1} parent=5 // pred_check
        _
      $region10: #{tpu_custom_call.1} parent=5 // pred_check_branch
        %197 = sbr.rel (%p194) target = $region12
      $region11: #{tpu_custom_call.1} parent=5 // pred_region
        %s198 = ssub.s32 %s22, 1
        // Predicated region
        $region13: #{tpu_custom_call.1} parent=11 // pred_check
          %p199 = pneg %p95
        $region14: #{tpu_custom_call.1} parent=11 // pred_check_branch
          %201 = sbr.rel (%p199) target = $region16
        $region15: #{tpu_custom_call.1} parent=11 // pred_region
          %s203 = ssub.s32 2048, 2048
          %204 = vsyncadd [#allocation8], %s203
          %s205 = sshll.u32 [#allocation9], 4
          %s206 = int_to_ptr.vmem [resolvable:$true] %s205
          %211 = dma.hbm_to_vmem [thread:$0]  %s2, 2048, %s206, [#allocation8], 128, 128, 8
        $region16: #{tpu_custom_call.1} parent=11 // pred_fallthru
          _
        // Predicated region
        $region17: #{tpu_custom_call.1} parent=11 // pred_check
          %p212 = pneg %p116
        $region18: #{tpu_custom_call.1} parent=11 // pred_check_branch
          %214 = sbr.rel (%p212) target = $region20
        $region19: #{tpu_custom_call.1} parent=11 // pred_region
          _
        $region20: #{tpu_custom_call.1} parent=11 // pred_fallthru
          _
        // Predicated region
        $region21: #{tpu_custom_call.1} parent=11 // pred_check
          %p215 = pneg %p137
        $region22: #{tpu_custom_call.1} parent=11 // pred_check_branch
          %217 = sbr.rel (%p215) target = $region24
        $region23: #{tpu_custom_call.1} parent=11 // pred_region
          _
        $region24: #{tpu_custom_call.1} parent=11 // pred_fallthru
          _
        // Predicated region
        $region25: #{tpu_custom_call.1} parent=11 // pred_check
          %p218 = pneg %p158
        $region26: #{tpu_custom_call.1} parent=11 // pred_check_branch
          %220 = sbr.rel (%p218) target = $region28
        $region27: #{tpu_custom_call.1} parent=11 // pred_region
          _
        $region28: #{tpu_custom_call.1} parent=11 // pred_fallthru
          _
      $region12: #{tpu_custom_call.1} parent=5 // pred_fallthru
        _
      %p221 = scmp.lt.s32.totalorder %s22, 2
      // Predicated region
      $region29: #{tpu_custom_call.1} parent=5 // pred_check
        %p222 = pneg %p221
      $region30: #{tpu_custom_call.1} parent=5 // pred_check_branch
        %224 = sbr.rel (%p222) target = $region32
      $region31: #{tpu_custom_call.1} parent=5 // pred_region
        // Predicated region
        $region33: #{tpu_custom_call.1} parent=31 // pred_check
          %p225 = pneg %p42
        $region34: #{tpu_custom_call.1} parent=31 // pred_check_branch
          %227 = sbr.rel (%p225) target = $region36
        $region35: #{tpu_custom_call.1} parent=31 // pred_region
          %s228 = sand.u32 %s32, 1
          %s229 = scalar_lea.sflag [#allocation5], %s228
          %s230 = sand.u32 %s32, 1
          %s231 = smul.addr %s230, 128
          %s232 = scalar_lea.vmem [#allocation4], %s231
          %s234 = ssub.s32 2048, 2048
          %235 = vsyncadd %s229, %s234
          %s236 = smul.addr %s22, 128
          %s237 = scalar_lea.hbm %s0, %s236
          %s238 = sshll.u32 %s232, 4
          %s239 = int_to_ptr.vmem [resolvable:$true] %s238
          %244 = dma.hbm_to_vmem [thread:$0]  %s237, 2048, %s239, %s229, 256, 128, 8
        $region36: #{tpu_custom_call.1} parent=31 // pred_fallthru
          _
        // Predicated region
        $region37: #{tpu_custom_call.1} parent=31 // pred_check
          %p245 = pneg %p68
        $region38: #{tpu_custom_call.1} parent=31 // pred_check_branch
          %247 = sbr.rel (%p245) target = $region40
        $region39: #{tpu_custom_call.1} parent=31 // pred_region
          %s248 = sand.u32 %s22, 1
          %s249 = scalar_lea.sflag [#allocation8], %s248
          %s250 = sand.u32 %s58, 1
          %s251 = smul.addr %s250, 8
          %s252 = scalar_lea.vmem [#allocation7], %s251
          %s254 = ssub.s32 128, 128
          %255 = vsyncadd %s249, %s254
          %s256 = smul.addr %s22, 128
          %s257 = scalar_lea.hbm %s1, %s256
          %s259 = sshll.u32 %s252, 4
          %s260 = int_to_ptr.vmem [resolvable:$true] %s259
          %262 = dma.hbm_to_vmem [thread:$0]  %s257, 128, %s260, %s249
        $region40: #{tpu_custom_call.1} parent=31 // pred_fallthru
          _
      $region32: #{tpu_custom_call.1} parent=5 // pred_fallthru
        _
      %p263 = scmp.le.s32.totalorder 1, %s22
      %p264 = scmp.lt.s32.totalorder %s22, 3
      %p265 = pnand %p263, %p264
      %p266 = pneg %p265
      // Predicated region
      $region41: #{tpu_custom_call.1} parent=5 // pred_check
        _
      $region42: #{tpu_custom_call.1} parent=5 // pred_check_branch
        %268 = sbr.rel (%p265) target = $region44
      $region43: #{tpu_custom_call.1} parent=5 // pred_region
        %s269 = ssub.s32 %s22, 1
        %s270 = sand.u32 %s35, 1
        %s271 = scalar_lea.sflag [#allocation5], %s270
        %s272 = sand.u32 %s35, 1
        %s273 = smul.addr %s272, 128
        %s274 = scalar_lea.vmem [#allocation4], %s273
        // Predicated region
        $region45: #{tpu_custom_call.1} parent=43 // pred_check
          %p275 = pneg %p48
        $region46: #{tpu_custom_call.1} parent=43 // pred_check_branch
          %277 = sbr.rel (%p275) target = $region48
        $region47: #{tpu_custom_call.1} parent=43 // pred_region
          %278 = dma.done %s271, 2048
        $region48: #{tpu_custom_call.1} parent=43 // pred_fallthru
          _
        %s279 = sand.u32 %s27, 1
        %s280 = scalar_lea.sflag [#allocation8], %s279
        %s281 = sand.u32 %s61, 1
        %s282 = smul.addr %s281, 8
        %s283 = scalar_lea.vmem [#allocation7], %s282
        // Predicated region
        $region49: #{tpu_custom_call.1} parent=43 // pred_check
          %p284 = pneg %p74
        $region50: #{tpu_custom_call.1} parent=43 // pred_check_branch
          %286 = sbr.rel (%p284) target = $region52
        $region51: #{tpu_custom_call.1} parent=43 // pred_region
          %287 = dma.done %s280, 128
        $region52: #{tpu_custom_call.1} parent=43 // pred_fallthru
          _
        // Predicated region
        $region53: #{tpu_custom_call.1} parent=43 // pred_check
          %p288 = pneg %p95
        $region54: #{tpu_custom_call.1} parent=43 // pred_check_branch
          %290 = sbr.rel (%p288) target = $region56
        $region55: #{tpu_custom_call.1} parent=43 // pred_region
          %291 = dma.done [#allocation8], 2048
        $region56: #{tpu_custom_call.1} parent=43 // pred_fallthru
          _
        %s292 = sand.u32 %s35, 1
        %s293 = scalar_lea.sflag [#allocation5], %s292
        %s294 = sand.u32 %s35, 1
        %s295 = smul.addr %s294, 128
        %s296 = scalar_lea.vmem [#allocation4], %s295
        %p297 = pneg %p48
        %p298 = pneg %p45
        %s299 = sand.u32 %s27, 1
        %s300 = scalar_lea.sflag [#allocation8], %s299
        %s301 = sand.u32 %s61, 1
        %s302 = smul.addr %s301, 8
        %s303 = scalar_lea.vmem [#allocation7], %s302
        %p304 = pneg %p74
        %p305 = pneg %p71
        %p306 = pneg %p95
        %p307 = pneg %p92
        %p308 = pneg %p116
        %p309 = pneg %p113
        %p310 = pneg %p137
        %p311 = pneg %p134
        %p312 = pneg %p158
        %p313 = pneg %p155
        %p314 = pneg %p184
        %p315 = pneg %p181
        %s316 = sand.u32 %s171, 1
        %s317 = scalar_lea.sflag [#allocation6], %s316
        %s318 = sand.u32 %s171, 1
        %s319 = smul.addr %s318, 8
        %s320 = scalar_lea.vmem [#allocation10], %s319
        %v321 = vld [vmem:[#allocation9] sm:$0xff]
        %v322 = vld [vmem:[#allocation9 + $0x8] sm:$0xff]
        %v323 = vld [vmem:[#allocation9 + $0x10] sm:$0xff]
        %v324 = vld [vmem:[#allocation9 + $0x18] sm:$0xff]
        %v325 = vld [vmem:[#allocation9 + $0x20] sm:$0xff]
        %v326 = vld [vmem:[#allocation9 + $0x28] sm:$0xff]
        %v327 = vld [vmem:[#allocation9 + $0x30] sm:$0xff]
        %v328 = vld [vmem:[#allocation9 + $0x38] sm:$0xff]
        %v329 = vld [vmem:[#allocation9 + $0x40] sm:$0xff]
        %v330 = vld [vmem:[#allocation9 + $0x48] sm:$0xff]
        %v331 = vld [vmem:[#allocation9 + $0x50] sm:$0xff]
        %v332 = vld [vmem:[#allocation9 + $0x58] sm:$0xff]
        %v333 = vld [vmem:[#allocation9 + $0x60] sm:$0xff]
        %v334 = vld [vmem:[#allocation9 + $0x68] sm:$0xff]
        %v335 = vld [vmem:[#allocation9 + $0x70] sm:$0xff]
        %v336 = vld [vmem:[#allocation9 + $0x78] sm:$0xff]
        %v337 = vld [vmem:[%s3] sm:$0x1]
        %v338 = vld [vmem:[%s4] sm:$0x1]
        %s339 = sld [smem:[#allocation3]]
        %v340 = vld [vmem:[%s274] sm:$0xff]
        %v341 = vld [vmem:[%s274 + $0x8] sm:$0xff]
        %v342 = vld [vmem:[%s274 + $0x10] sm:$0xff]
        %v343 = vld [vmem:[%s274 + $0x18] sm:$0xff]
        %v344 = vld [vmem:[%s274 + $0x20] sm:$0xff]
        %v345 = vld [vmem:[%s274 + $0x28] sm:$0xff]
        %v346 = vld [vmem:[%s274 + $0x30] sm:$0xff]
        %v347 = vld [vmem:[%s274 + $0x38] sm:$0xff]
        %v348 = vld [vmem:[%s274 + $0x40] sm:$0xff]
        %v349 = vld [vmem:[%s274 + $0x48] sm:$0xff]
        %v350 = vld [vmem:[%s274 + $0x50] sm:$0xff]
        %v351 = vld [vmem:[%s274 + $0x58] sm:$0xff]
        %v352 = vld [vmem:[%s274 + $0x60] sm:$0xff]
        %v353 = vld [vmem:[%s274 + $0x68] sm:$0xff]
        %v354 = vld [vmem:[%s274 + $0x70] sm:$0xff]
        %v355 = vld [vmem:[%s274 + $0x78] sm:$0xff]
        %v357 = vlaneseq
        %v358 = vshrl.u32 %v357, 7
        %v359 = vsub.s32 0, %v358
        %v360 = vrot.slane %v337, %v359
        %362 = vmatprep.subr.mxu0 0.0
        %363 = vmatpush1.msra.mxu0 %v321
        %364 = vmatprep.subr.mxu0 0.0
        %365 = vmatpush1.msra.mxu0 %v322
        %366 = vmatprep.subr.mxu0 0.0
        %367 = vmatpush1.msra.mxu0 %v323
        %368 = vmatprep.subr.mxu0 0.0
        %369 = vmatpush1.msra.mxu0 %v324
        %370 = vmatprep.subr.mxu0 0.0
        %371 = vmatpush1.msra.mxu0 %v325
        %372 = vmatprep.subr.mxu0 0.0
        %373 = vmatpush1.msra.mxu0 %v326
        %374 = vmatprep.subr.mxu0 0.0
        %375 = vmatpush1.msra.mxu0 %v327
        %376 = vmatprep.subr.mxu0 0.0
        %377 = vmatpush1.msra.mxu0 %v328
        %378 = vmatprep.subr.mxu0 0.0
        %379 = vmatpush1.msra.mxu0 %v329
        %380 = vmatprep.subr.mxu0 0.0
        %381 = vmatpush1.msra.mxu0 %v330
        %382 = vmatprep.subr.mxu0 0.0
        %383 = vmatpush1.msra.mxu0 %v331
        %384 = vmatprep.subr.mxu0 0.0
        %385 = vmatpush1.msra.mxu0 %v332
        %386 = vmatprep.subr.mxu0 0.0
        %387 = vmatpush1.msra.mxu0 %v333
        %388 = vmatprep.subr.mxu0 0.0
        %389 = vmatpush1.msra.mxu0 %v334
        %390 = vmatprep.subr.mxu0 0.0
        %391 = vmatpush1.msra.mxu0 %v335
        %392 = vmatprep.subr.mxu0 0.0
        %393 = vmatpush1.msra.mxu0 %v336
        %394 = vmatprep.subr.mxu0 0.0
        %395 = vmatpush1.msra.mxu0 0.0
        %396 = vmatprep.subr.mxu0 0.0
        %397 = vmatpush1.msra.mxu0 0.0
        %398 = vmatprep.subr.mxu0 0.0
        %399 = vmatpush1.msra.mxu0 0.0
        %400 = vmatprep.subr.mxu0 0.0
        %401 = vmatpush1.msra.mxu0 0.0
        %402 = vmatprep.subr.mxu0 0.0
        %403 = vmatpush1.msra.mxu0 0.0
        %404 = vmatprep.subr.mxu0 0.0
        %405 = vmatpush1.msra.mxu0 0.0
        %406 = vmatprep.subr.mxu0 0.0
        %407 = vmatpush1.msra.mxu0 0.0
        %408 = vmatprep.subr.mxu0 0.0
        %409 = vmatpush1.msra.mxu0 0.0
        %410 = vmatprep.subr.mxu0 0.0
        %411 = vmatpush1.msra.mxu0 0.0
        %412 = vmatprep.subr.mxu0 0.0
        %413 = vmatpush1.msra.mxu0 0.0
        %414 = vmatprep.subr.mxu0 0.0
        %415 = vmatpush1.msra.mxu0 0.0
        %416 = vmatprep.subr.mxu0 0.0
        %417 = vmatpush1.msra.mxu0 0.0
        %418 = vmatprep.subr.mxu0 0.0
        %419 = vmatpush1.msra.mxu0 0.0
        %420 = vmatprep.subr.mxu0 0.0
        %421 = vmatpush1.msra.mxu0 0.0
        %422 = vmatprep.subr.mxu0 0.0
        %423 = vmatpush1.msra.mxu0 0.0
        %424 = vmatprep.subr.mxu0 0.0
        %425 = vmatpush1.msra.mxu0 0.0
        %426 = vmatprep.mubr.f32.mxu0 0.0
        %427 = vmatmul.mubr.f32.gmra.mrb[0].mxu0 %v340
        %v428 = vpop.f32.mrb[0].mxu0
        %v429 = vadd.f32 %v360, %v428
        %v430 = vpop.f32.mrb[0].mxu0
        %431 = vmatprep.mubr.f32.mxu0 0.0
        %432 = vmatmul.mubr.f32.gmra.mrb[0].mxu0 %v341
        %v433 = vpop.f32.mrb[0].mxu0
        %v434 = vadd.f32 %v360, %v433
        %v435 = vpop.f32.mrb[0].mxu0
        %436 = vmatprep.mubr.f32.mxu0 0.0
        %437 = vmatmul.mubr.f32.gmra.mrb[0].mxu0 %v342
        %v438 = vpop.f32.mrb[0].mxu0
        %v439 = vadd.f32 %v360, %v438
        %v440 = vpop.f32.mrb[0].mxu0
        %441 = vmatprep.mubr.f32.mxu0 0.0
        %442 = vmatmul.mubr.f32.gmra.mrb[0].mxu0 %v343
        %v443 = vpop.f32.mrb[0].mxu0
        %v444 = vadd.f32 %v360, %v443
        %v445 = vpop.f32.mrb[0].mxu0
        %446 = vmatprep.mubr.f32.mxu0 0.0
        %447 = vmatmul.mubr.f32.gmra.mrb[0].mxu0 %v344
        %v448 = vpop.f32.mrb[0].mxu0
        %v449 = vadd.f32 %v360, %v448
        %v450 = vpop.f32.mrb[0].mxu0
        %451 = vmatprep.mubr.f32.mxu0 0.0
        %452 = vmatmul.mubr.f32.gmra.mrb[0].mxu0 %v345
        %v453 = vpop.f32.mrb[0].mxu0
        %v454 = vadd.f32 %v360, %v453
        %v455 = vpop.f32.mrb[0].mxu0
        %456 = vmatprep.mubr.f32.mxu0 0.0
        %457 = vmatmul.mubr.f32.gmra.mrb[0].mxu0 %v346
        %v458 = vpop.f32.mrb[0].mxu0
        %v459 = vadd.f32 %v360, %v458
        %v460 = vpop.f32.mrb[0].mxu0
        %461 = vmatprep.mubr.f32.mxu0 0.0
        %462 = vmatmul.mubr.f32.gmra.mrb[0].mxu0 %v347
        %v463 = vpop.f32.mrb[0].mxu0
        %v464 = vadd.f32 %v360, %v463
        %v465 = vpop.f32.mrb[0].mxu0
        %466 = vmatprep.mubr.f32.mxu0 0.0
        %467 = vmatmul.mubr.f32.gmra.mrb[0].mxu0 %v348
        %v468 = vpop.f32.mrb[0].mxu0
        %v469 = vadd.f32 %v360, %v468
        %v470 = vpop.f32.mrb[0].mxu0
        %471 = vmatprep.mubr.f32.mxu0 0.0
        %472 = vmatmul.mubr.f32.gmra.mrb[0].mxu0 %v349
        %v473 = vpop.f32.mrb[0].mxu0
        %v474 = vadd.f32 %v360, %v473
        %v475 = vpop.f32.mrb[0].mxu0
        %476 = vmatprep.mubr.f32.mxu0 0.0
        %477 = vmatmul.mubr.f32.gmra.mrb[0].mxu0 %v350
        %v478 = vpop.f32.mrb[0].mxu0
        %v479 = vadd.f32 %v360, %v478
        %v480 = vpop.f32.mrb[0].mxu0
        %481 = vmatprep.mubr.f32.mxu0 0.0
        %482 = vmatmul.mubr.f32.gmra.mrb[0].mxu0 %v351
        %v483 = vpop.f32.mrb[0].mxu0
        %v484 = vadd.f32 %v360, %v483
        %v485 = vpop.f32.mrb[0].mxu0
        %486 = vmatprep.mubr.f32.mxu0 0.0
        %487 = vmatmul.mubr.f32.gmra.mrb[0].mxu0 %v352
        %v488 = vpop.f32.mrb[0].mxu0
        %v489 = vadd.f32 %v360, %v488
        %v490 = vpop.f32.mrb[0].mxu0
        %491 = vmatprep.mubr.f32.mxu0 0.0
        %492 = vmatmul.mubr.f32.gmra.mrb[0].mxu0 %v353
        %v493 = vpop.f32.mrb[0].mxu0
        %v494 = vadd.f32 %v360, %v493
        %v495 = vpop.f32.mrb[0].mxu0
        %496 = vmatprep.mubr.f32.mxu0 0.0
        %497 = vmatmul.mubr.f32.gmra.mrb[0].mxu0 %v354
        %v498 = vpop.f32.mrb[0].mxu0
        %v499 = vadd.f32 %v360, %v498
        %v500 = vpop.f32.mrb[0].mxu0
        %501 = vmatprep.mubr.f32.mxu0 0.0
        %502 = vmatmul.mubr.f32.gmra.mrb[0].mxu0 %v355
        %v503 = vpop.f32.mrb[0].mxu0
        %v504 = vadd.f32 %v360, %v503
        %v505 = vpop.f32.mrb[0].mxu0
        %506 = vdwg.mxu0
        %v507 = vmax.f32 %v429, 0.0
        %v508 = vmax.f32 %v434, 0.0
        %v509 = vmax.f32 %v439, 0.0
        %v510 = vmax.f32 %v444, 0.0
        %v511 = vmax.f32 %v449, 0.0
        %v512 = vmax.f32 %v454, 0.0
        %v513 = vmax.f32 %v459, 0.0
        %v514 = vmax.f32 %v464, 0.0
        %v515 = vmax.f32 %v469, 0.0
        %v516 = vmax.f32 %v474, 0.0
        %v517 = vmax.f32 %v479, 0.0
        %v518 = vmax.f32 %v484, 0.0
        %v519 = vmax.f32 %v489, 0.0
        %v520 = vmax.f32 %v494, 0.0
        %v521 = vmax.f32 %v499, 0.0
        %v522 = vmax.f32 %v504, 0.0
        %v524 = vlaneseq
        %v525 = vshrl.u32 %v524, 7
        %v526 = vsub.s32 0, %v525
        %v527 = vrot.slane %v338, %v526
        %v529 = vmul.f32 %v507, %v527
        %v530 = vmul.f32 %v508, %v527
        %v531 = vmul.f32 %v509, %v527
        %v532 = vmul.f32 %v510, %v527
        %v533 = vmul.f32 %v511, %v527
        %v534 = vmul.f32 %v512, %v527
        %v535 = vmul.f32 %v513, %v527
        %v536 = vmul.f32 %v514, %v527
        %v537 = vmul.f32 %v515, %v527
        %v538 = vmul.f32 %v516, %v527
        %v539 = vmul.f32 %v517, %v527
        %v540 = vmul.f32 %v518, %v527
        %v541 = vmul.f32 %v519, %v527
        %v542 = vmul.f32 %v520, %v527
        %v543 = vmul.f32 %v521, %v527
        %v544 = vmul.f32 %v522, %v527
        %545 = vadd.xlane.f32.xlu0 %v529
        %v546 = vpop.xlane.xlu0 %545
        %547 = vadd.xlane.f32.xlu0 %v530
        %v548 = vpop.xlane.xlu0 %547
        %549 = vadd.xlane.f32.xlu0 %v531
        %v550 = vpop.xlane.xlu0 %549
        %551 = vadd.xlane.f32.xlu0 %v532
        %v552 = vpop.xlane.xlu0 %551
        %553 = vadd.xlane.f32.xlu0 %v533
        %v554 = vpop.xlane.xlu0 %553
        %555 = vadd.xlane.f32.xlu0 %v534
        %v556 = vpop.xlane.xlu0 %555
        %557 = vadd.xlane.f32.xlu0 %v535
        %v558 = vpop.xlane.xlu0 %557
        %559 = vadd.xlane.f32.xlu0 %v536
        %v560 = vpop.xlane.xlu0 %559
        %561 = vadd.xlane.f32.xlu0 %v537
        %v562 = vpop.xlane.xlu0 %561
        %563 = vadd.xlane.f32.xlu0 %v538
        %v564 = vpop.xlane.xlu0 %563
        %565 = vadd.xlane.f32.xlu0 %v539
        %v566 = vpop.xlane.xlu0 %565
        %567 = vadd.xlane.f32.xlu0 %v540
        %v568 = vpop.xlane.xlu0 %567
        %569 = vadd.xlane.f32.xlu0 %v541
        %v570 = vpop.xlane.xlu0 %569
        %571 = vadd.xlane.f32.xlu0 %v542
        %v572 = vpop.xlane.xlu0 %571
        %573 = vadd.xlane.f32.xlu0 %v543
        %v574 = vpop.xlane.xlu0 %573
        %575 = vadd.xlane.f32.xlu0 %v544
        %v576 = vpop.xlane.xlu0 %575
        %v577 = vstv %s339
        %v578 = vadd.f32 %v546, %v577
        %v579 = vadd.f32 %v548, %v577
        %v580 = vadd.f32 %v550, %v577
        %v581 = vadd.f32 %v552, %v577
        %v582 = vadd.f32 %v554, %v577
        %v583 = vadd.f32 %v556, %v577
        %v584 = vadd.f32 %v558, %v577
        %v585 = vadd.f32 %v560, %v577
        %v586 = vadd.f32 %v562, %v577
        %v587 = vadd.f32 %v564, %v577
        %v588 = vadd.f32 %v566, %v577
        %v589 = vadd.f32 %v568, %v577
        %v590 = vadd.f32 %v570, %v577
        %v591 = vadd.f32 %v572, %v577
        %v592 = vadd.f32 %v574, %v577
        %v593 = vadd.f32 %v576, %v577
        %v594 = vld [vmem:[%s283] sm:$0xff]
        %v611 = vlaneseq
        %v612 = vand.u32 %v611, 127
        %v613 = vlaneseq
        %v614 = vshrl.u32 %v613, 7
        %v615 = vsub.s32 %v612, %v614
        %v616 = vrot.slane %v578, %v615
        %v617 = vlaneseq
        %v618 = vshrl.u32 %v617, 7
        %v619 = vsub.s32 %v612, %v618
        %v620 = vrot.slane %v579, %v619
        %v621 = vlaneseq
        %v622 = vshrl.u32 %v621, 7
        %v623 = vsub.s32 %v612, %v622
        %v624 = vrot.slane %v580, %v623
        %v625 = vlaneseq
        %v626 = vshrl.u32 %v625, 7
        %v627 = vsub.s32 %v612, %v626
        %v628 = vrot.slane %v581, %v627
        %v629 = vlaneseq
        %v630 = vshrl.u32 %v629, 7
        %v631 = vsub.s32 %v612, %v630
        %v632 = vrot.slane %v582, %v631
        %v633 = vlaneseq
        %v634 = vshrl.u32 %v633, 7
        %v635 = vsub.s32 %v612, %v634
        %v636 = vrot.slane %v583, %v635
        %v637 = vlaneseq
        %v638 = vshrl.u32 %v637, 7
        %v639 = vsub.s32 %v612, %v638
        %v640 = vrot.slane %v584, %v639
        %v641 = vlaneseq
        %v642 = vshrl.u32 %v641, 7
        %v643 = vsub.s32 %v612, %v642
        %v644 = vrot.slane %v585, %v643
        %v645 = vlaneseq
        %v646 = vshrl.u32 %v645, 7
        %v647 = vsub.s32 %v612, %v646
        %v648 = vrot.slane %v586, %v647
        %v649 = vlaneseq
        %v650 = vshrl.u32 %v649, 7
        %v651 = vsub.s32 %v612, %v650
        %v652 = vrot.slane %v587, %v651
        %v653 = vlaneseq
        %v654 = vshrl.u32 %v653, 7
        %v655 = vsub.s32 %v612, %v654
        %v656 = vrot.slane %v588, %v655
        %v657 = vlaneseq
        %v658 = vshrl.u32 %v657, 7
        %v659 = vsub.s32 %v612, %v658
        %v660 = vrot.slane %v589, %v659
        %v661 = vlaneseq
        %v662 = vshrl.u32 %v661, 7
        %v663 = vsub.s32 %v612, %v662
        %v664 = vrot.slane %v590, %v663
        %v665 = vlaneseq
        %v666 = vshrl.u32 %v665, 7
        %v667 = vsub.s32 %v612, %v666
        %v668 = vrot.slane %v591, %v667
        %v669 = vlaneseq
        %v670 = vshrl.u32 %v669, 7
        %v671 = vsub.s32 %v612, %v670
        %v672 = vrot.slane %v592, %v671
        %v673 = vlaneseq
        %v674 = vshrl.u32 %v673, 7
        %v675 = vsub.s32 %v612, %v674
        %v676 = vrot.slane %v593, %v675
        %vm677 = vcmask 1041409
        %v678 = vsel %vm677, %v620, %v616
        %vm679 = vcmask 1042434
        %v680 = vsel %vm679, %v624, %v678
        %vm681 = vcmask 1043459
        %v682 = vsel %vm681, %v628, %v680
        %vm683 = vcmask 1044484
        %v684 = vsel %vm683, %v632, %v682
        %vm685 = vcmask 1045509
        %v686 = vsel %vm685, %v636, %v684
        %vm687 = vcmask 1046534
        %v688 = vsel %vm687, %v640, %v686
        %vm689 = vcmask 1047559
        %v690 = vsel %vm689, %v644, %v688
        %v691 = vsel %vm677, %v652, %v648
        %v692 = vsel %vm679, %v656, %v691
        %v693 = vsel %vm681, %v660, %v692
        %v694 = vsel %vm683, %v664, %v693
        %v695 = vsel %vm685, %v668, %v694
        %v696 = vsel %vm687, %v672, %v695
        %v697 = vsel %vm689, %v676, %v696
        %700 = vxpose.xlu0.b32.start [1/16] %v690, 128
        %701 = vxpose.xlu0.b32.cont [2/16] %v697, 128
        %702 = vxpose.xlu0.b32.cont [3/16] 0.0, 128
        %703 = vxpose.xlu0.b32.cont [4/16] 0.0, 128
        %704 = vxpose.xlu0.b32.cont [5/16] 0.0, 128
        %705 = vxpose.xlu0.b32.cont [6/16] 0.0, 128
        %706 = vxpose.xlu0.b32.cont [7/16] 0.0, 128
        %707 = vxpose.xlu0.b32.cont [8/16] 0.0, 128
        %708 = vxpose.xlu0.b32.cont [9/16] 0.0, 128
        %709 = vxpose.xlu0.b32.cont [10/16] 0.0, 128
        %710 = vxpose.xlu0.b32.cont [11/16] 0.0, 128
        %711 = vxpose.xlu0.b32.cont [12/16] 0.0, 128
        %712 = vxpose.xlu0.b32.cont [13/16] 0.0, 128
        %713 = vxpose.xlu0.b32.cont [14/16] 0.0, 128
        %714 = vxpose.xlu0.b32.cont [15/16] 0.0, 128
        %715 = vxpose.xlu0.b32.end [16/16] 0.0, 128
        %v716 = vpop.trf.xlu0
        %v717 = vpop.trf.xlu0
        %v718 = vpop.trf.xlu0
        %v719 = vpop.trf.xlu0
        %v720 = vpop.trf.xlu0
        %v721 = vpop.trf.xlu0
        %v722 = vpop.trf.xlu0
        %v723 = vpop.trf.xlu0
        %v724 = vpop.trf.xlu0
        %v725 = vpop.trf.xlu0
        %v726 = vpop.trf.xlu0
        %v727 = vpop.trf.xlu0
        %v728 = vpop.trf.xlu0
        %v729 = vpop.trf.xlu0
        %v730 = vpop.trf.xlu0
        %v731 = vpop.trf.xlu0
        %v732 = vmul.f32 %v716, %v594
        %vm733 = vcmask 130048
        %v734 = vsel %vm733, %v732, -inf
        %735 = vmax.xlane.f32.xlu0 %v734
        %v736 = vpop.xlane.xlu0 %735
        %v737 = vsub.f32 %v732, %v736
        %v738 = vmul.f32 %v737, 1.442695
        %v739 = vpow.pop %v738
        %v740 = vmul.f32 %v739, %v594
        %v741 = vsel %vm733, %v740, 0.0
        %742 = vadd.xlane.f32.xlu0 %v741
        %v743 = vpop.xlane.xlu0 %742
        %v744 = vadd.f32 %v743, 1e-06
        %v745 = vrcp.pop %v744
        %v746 = vmul.f32 %v740, %v745
        %747 = vst.msk [vmem:[%s320] sm:$0xff] %vm733, %v746
        %s748 = sand.u32 %s171, 1
        %s749 = scalar_lea.sflag [#allocation6], %s748
        %s750 = sand.u32 %s171, 1
        %s751 = smul.addr %s750, 8
        %s752 = scalar_lea.vmem [#allocation10], %s751
        // Predicated region
        $region57: #{tpu_custom_call.1} parent=43 // pred_check
          %p753 = pneg %p181
        $region58: #{tpu_custom_call.1} parent=43 // pred_check_branch
          %755 = sbr.rel (%p753) target = $region60
        $region59: #{tpu_custom_call.1} parent=43 // pred_region
          %s757 = ssub.s32 128, 128
          %758 = vsyncadd %s749, %s757
          %s759 = smul.addr %s27, 128
          %s760 = scalar_lea.hbm %s6, %s759
          %s762 = sshll.u32 %s752, 4
          %s763 = int_to_ptr.vmem [resolvable:$true] %s762
          %765 = dma.vmem_to_hbm [thread:$0]  %s763, 128, %s760, %s749
        $region60: #{tpu_custom_call.1} parent=43 // pred_fallthru
          _
      $region44: #{tpu_custom_call.1} parent=5 // pred_fallthru
        _
      %p766 = scmp.le.s32.totalorder 2, %s22
      // Predicated region
      $region61: #{tpu_custom_call.1} parent=5 // pred_check
        %p767 = pneg %p766
      $region62: #{tpu_custom_call.1} parent=5 // pred_check_branch
        %769 = sbr.rel (%p767) target = $region64
      $region63: #{tpu_custom_call.1} parent=5 // pred_region
        %s770 = ssub.s32 %s22, 2
        // Predicated region
        $region65: #{tpu_custom_call.1} parent=63 // pred_check
          %p771 = pneg %p187
        $region66: #{tpu_custom_call.1} parent=63 // pred_check_branch
          %773 = sbr.rel (%p771) target = $region68
        $region67: #{tpu_custom_call.1} parent=63 // pred_region
          %s774 = sand.u32 %s172, 1
          %s775 = scalar_lea.sflag [#allocation6], %s774
          %s776 = sand.u32 %s172, 1
          %s777 = smul.addr %s776, 8
          %s778 = scalar_lea.vmem [#allocation10], %s777
          %779 = dma.done %s775, 128
        $region68: #{tpu_custom_call.1} parent=63 // pred_fallthru
          _
      $region64: #{tpu_custom_call.1} parent=5 // pred_fallthru
        _
    $region6: #{tpu_custom_call.1} parent=1 // loop_footer
      %s26 = sadd.s32 1, %s22
    $region7: #{tpu_custom_call.1} parent=1 // loop_footer_branch
      %21 = sbr.rel target = $region3
    $region8: #{tpu_custom_call.1} parent=1 // loop_exit
      _
    %780 = vsyncpa [#allocation5], 1
    %s781 = scalar_lea.sflag [#allocation5], 1
    %782 = vsyncpa %s781, 1
    %783 = vsyncpa [#allocation8], 1
    %s784 = scalar_lea.sflag [#allocation8], 1
    %785 = vsyncpa %s784, 1
    %786 = vsyncpa [#allocation6], 1
    %s787 = scalar_lea.sflag [#allocation6], 1
    %788 = vsyncpa %s787, 1

</llo_original>
